<compile_context>
chip_gen: v6e
topology: v6e:2x2x1
jax: 0.10.0
libtpu: 0.0.40
codegen_flags: <defaults>
</compile_context>

<pallas_src>
import numpy as np

import jax
import jax.numpy as jnp
from jax.experimental import pallas as pl
from jax.experimental.pallas import tpu as pltpu


H = W = 11   # required by the module (Flatten -> 25 features)


# -----------------------------------------------------------------------------
# Parameters (deterministic synthetic init, PyTorch layouts: OIHW conv, [out,in] FC)
# -----------------------------------------------------------------------------
def init_params(key, in_channels, size, out_channels):
    def conv_p(k, cin, cout, ksz):
        k1, k2 = jax.random.split(k)
        fan_in = cin * ksz * ksz
        w = jax.random.normal(k1, (cout, cin, ksz, ksz), jnp.float32) / np.sqrt(fan_in)
        b = jax.random.normal(k2, (cout,), jnp.float32) * 0.01
        return w, b

    def fc_p(k, fin, fout):
        k1, k2 = jax.random.split(k)
        w = jax.random.normal(k1, (fout, fin), jnp.float32) / np.sqrt(fin)
        b = jax.random.normal(k2, (fout,), jnp.float32) * 0.01
        return w, b

    ks = jax.random.split(key, 9)
    return {
        "conv1": conv_p(ks[0], in_channels, size, 3),
        "conv2": conv_p(ks[1], in_channels + size, size, 3),
        "conv3": conv_p(ks[2], in_channels + size, size, 3),
        "conv4": conv_p(ks[3], size, size, 3),
        "conv5": conv_p(ks[4], size, size, 3),
        "conv6": conv_p(ks[5], size, 1, 1),
        "fc1": fc_p(ks[6], 25, 25),
        "fc2": fc_p(ks[7], 25, 25),
        "fc3": fc_p(ks[8], 25, out_channels),
    }


# -----------------------------------------------------------------------------
# Host-side one-time packing: fold conv1..conv6 + Flatten + FC1 into one affine map
# -----------------------------------------------------------------------------
def _conv(x, wb, pad, hp):
    w_, b_ = wb
    y = jax.lax.conv_general_dilated(
        x, w_, window_strides=(1, 1), padding=[(pad, pad), (pad, pad)],
        dimension_numbers=("NCHW", "OIHW", "NCHW"), precision=hp)
    return y + b_[None, :, None, None]


def _conv_stack(x, params, hp):
    """conv1 .. conv6 + Flatten, op-for-op as in the PyTorch module (affine in x)."""
    out = _conv(x, params["conv1"], 1, hp)
    out = jnp.concatenate((out, x), axis=1)
    out = _conv(out, params["conv2"], 1, hp)
    out = jnp.concatenate((out, x), axis=1)
    out = _conv(out, params["conv3"], 0, hp)
    out = _conv(out, params["conv4"], 0, hp)
    out = _conv(out, params["conv5"], 0, hp)
    out = _conv(out, params["conv6"], 0, hp)
    return out.reshape(out.shape[0], -1)                       # [B, 25]


def pack_params(params, in_channels):
    """Build Afold [H*W*Cin, 25], bfold [1, 25] such that
       FC1_preact(x) == x.reshape(N,-1) @ Afold + bfold  exactly (the conv stack
       and FC1 are affine), plus the remaining FC2/FC3 weights ([in,out] layout)."""
    hp = jax.lax.Precision.HIGHEST
    d = in_channels * H * W

    basis = jnp.eye(d, dtype=jnp.float32).reshape(d, in_channels, H, W)
    zero = jnp.zeros((1, in_channels, H, W), jnp.float32)
    c = _conv_stack(zero, params, hp)                          # [1, 25]  bias path
    a = _conv_stack(basis, params, hp) - c                     # [d, 25]  linear part

    wf1, bf1 = params["fc1"]
    wf2, bf2 = params["fc2"]
    wf3, bf3 = params["fc3"]
    afold = jnp.dot(a, wf1.T, precision=hp)                    # [d, 25]
    bfold = jnp.dot(c, wf1.T, precision=hp) + bf1[None, :]     # [1, 25]

    return {
        "afold": afold.astype(jnp.float32),
        "bfold": bfold.astype(jnp.float32),
        "wf2": wf2.T.astype(jnp.float32), "bf2": bf2[None, :].astype(jnp.float32),
        "wf3": wf3.T.astype(jnp.float32), "bf3": bf3[None, :].astype(jnp.float32),
    }


# -----------------------------------------------------------------------------
# Fused kernel: 3 matmuls + 2 LeakyReLUs per batch tile
# -----------------------------------------------------------------------------
def _fused_kernel(x_ref, a_ref, b1_ref, w2_ref, b2_ref, w3_ref, b3_ref, o_ref):
    f32 = jnp.float32
    slope = jnp.float32(0.01)

    h = jnp.dot(x_ref[...], a_ref[...], preferred_element_type=f32) + b1_ref[...]
    h = jnp.where(h > 0, h, slope * h)                         # LeakyReLU(0.01)
    h = jnp.dot(h, w2_ref[...], preferred_element_type=f32) + b2_ref[...]
    h = jnp.where(h > 0, h, slope * h)
    h = jnp.dot(h, w3_ref[...], preferred_element_type=f32) + b3_ref[...]
    o_ref[...] = h.astype(o_ref.dtype)


@jax.jit
def new_task_block_forward(x_nchw, packed):
    n, cin, h_in, w_in = x_nchw.shape
    assert (h_in, w_in) == (H, W), "spatial size must be 11x11 (Flatten -> 25)"
    afold = packed["afold"]
    d = afold.shape[0]
    assert d == cin * H * W
    out_channels = packed["bf3"].shape[1]

    # Batch tile: multiple of 8 (sublane), capped at 128 (fills the MXU M dim).
    tb = min(128, max(8, ((n + 7) // 8) * 8))
    n_pad = ((n + tb - 1) // tb) * tb

    x_flat = x_nchw.reshape(n, d).astype(jnp.float32)          # same order as Flatten
    if n_pad != n:
        x_flat = jnp.pad(x_flat, ((0, n_pad - n), (0, 0)))

    args = (x_flat, afold, packed["bfold"], packed["wf2"], packed["bf2"],
            packed["wf3"], packed["bf3"])

    in_specs = [pl.BlockSpec((tb, d), lambda b: (b, 0))]
    for a in args[1:]:                                         # whole-array weights,
        in_specs.append(pl.BlockSpec(a.shape, lambda b: (0, 0)))  # same block each step

    out = pl.pallas_call(
        _fused_kernel,
        out_shape=jax.ShapeDtypeStruct((n_pad, out_channels), jnp.float32),
        grid=(n_pad // tb,),
        in_specs=in_specs,
        out_specs=pl.BlockSpec((tb, out_channels), lambda b: (b, 0)),
        compiler_params=pltpu.CompilerParams(
            dimension_semantics=("parallel",)),
    )(*args)
    return out[:n]


# -----------------------------------------------------------------------------
# Pure-JAX reference (op-for-op mirror of the PyTorch module) for validation
# -----------------------------------------------------------------------------
def _reference_forward(x_nchw, params):
    hp = jax.lax.Precision.HIGHEST

    def fc(x, wb):
        w_, b_ = wb
        return jnp.dot(x, w_.T, precision=hp) + b_

    out = _conv_stack(x_nchw, params, hp)                      # [N, 25]
    out = jax.nn.leaky_relu(fc(out, params["fc1"]), 0.01)
    out = jax.nn.leaky_relu(fc(out, params["fc2"]), 0.01)
    return fc(out, params["fc3"])


# -----------------------------------------------------------------------------
if __name__ == "__main__":
    in_channels, size, out_channels = 4, 8, 10
    batch = 2

    key = jax.random.PRNGKey(0)
    k_x, k_p = jax.random.split(key)
    x = jax.random.normal(k_x, (batch, in_channels, H, W), jnp.float32)   # NCHW
    params = init_params(k_p, in_channels, size, out_channels)
    packed = pack_params(params, in_channels)

    y = jax.block_until_ready(new_task_block_forward(x, packed))
    assert y.shape == (batch, out_channels), y.shape

    y_ref = jax.block_until_ready(_reference_forward(x, params))
    np.testing.assert_allclose(np.asarray(y), np.asarray(y_ref),
                               rtol=5e-3, atol=5e-3)
    print("KERNEL_OK")
</pallas_src>

<mosaic_0001>
module attributes {stable_mosaic.version = 11 : i64} {
  func.func @_fused_kernel(%arg0: i32, %arg1: memref<8x484xf32, #tpu.memory_space<vmem>>, %arg2: memref<484x25xf32, #tpu.memory_space<vmem>>, %arg3: memref<1x25xf32, #tpu.memory_space<vmem>>, %arg4: memref<25x25xf32, #tpu.memory_space<vmem>>, %arg5: memref<1x25xf32, #tpu.memory_space<vmem>>, %arg6: memref<25x10xf32, #tpu.memory_space<vmem>>, %arg7: memref<1x10xf32, #tpu.memory_space<vmem>>, %arg8: memref<8x10xf32, #tpu.memory_space<vmem>>) attributes {dimension_semantics = [#tpu.dimension_semantics<parallel>], iteration_bounds = array<i64: 1>, scalar_prefetch = 0 : i64, scratch_operands = 0 : i64, tpu.core_type = #tpu.core_type<tc>, window_params = [{transform_indices = @transform_0, window_bounds = array<i64: 8, 484>}, {pipeline_mode = #tpu.pipeline_mode<synchronous>, transform_indices = @transform_1, window_bounds = array<i64: 484, 25>}, {pipeline_mode = #tpu.pipeline_mode<synchronous>, transform_indices = @transform_2, window_bounds = array<i64: 1, 25>}, {pipeline_mode = #tpu.pipeline_mode<synchronous>, transform_indices = @transform_3, window_bounds = array<i64: 25, 25>}, {pipeline_mode = #tpu.pipeline_mode<synchronous>, transform_indices = @transform_4, window_bounds = array<i64: 1, 25>}, {pipeline_mode = #tpu.pipeline_mode<synchronous>, transform_indices = @transform_5, window_bounds = array<i64: 25, 10>}, {pipeline_mode = #tpu.pipeline_mode<synchronous>, transform_indices = @transform_6, window_bounds = array<i64: 1, 10>}, {transform_indices = @transform_7, window_bounds = array<i64: 8, 10>}]} {
    %c0 = arith.constant 0 : index
    %c0_0 = arith.constant 0 : index
    %0 = vector.load %arg1[%c0, %c0_0] : memref<8x484xf32, #tpu.memory_space<vmem>>, vector<8x484xf32>
    %c0_1 = arith.constant 0 : index
    %c0_2 = arith.constant 0 : index
    %1 = vector.load %arg2[%c0_1, %c0_2] : memref<484x25xf32, #tpu.memory_space<vmem>>, vector<484x25xf32>
    %cst = arith.constant dense<0.000000e+00> : vector<8x25xf32>
    %2 = tpu.matmul %0, %1, %cst {dimension_numbers = #tpu.dot_dimension_numbers<[1], [0], [0], [1], [0, 0, 1, 1], [], []>} : vector<8x484xf32>, vector<484x25xf32>, vector<8x25xf32> -> vector<8x25xf32>
    %c0_3 = arith.constant 0 : index
    %c0_4 = arith.constant 0 : index
    %3 = vector.load %arg3[%c0_3, %c0_4] : memref<1x25xf32, #tpu.memory_space<vmem>>, vector<1x25xf32>
    %4 = vector.broadcast %3 : vector<1x25xf32> to vector<8x25xf32>
    %5 = arith.addf %2, %4 : vector<8x25xf32>
    %cst_5 = arith.constant 0.000000e+00 : f32
    %6 = vector.broadcast %cst_5 : f32 to vector<8x25xf32>
    %7 = arith.cmpf ogt, %5, %6 : vector<8x25xf32>
    %cst_6 = arith.constant 0.00999999977 : f32
    %8 = vector.broadcast %cst_6 : f32 to vector<8x25xf32>
    %9 = arith.mulf %8, %5 : vector<8x25xf32>
    %10 = arith.select %7, %5, %9 : vector<8x25xi1>, vector<8x25xf32>
    %c0_7 = arith.constant 0 : index
    %c0_8 = arith.constant 0 : index
    %11 = vector.load %arg4[%c0_7, %c0_8] : memref<25x25xf32, #tpu.memory_space<vmem>>, vector<25x25xf32>
    %cst_9 = arith.constant dense<0.000000e+00> : vector<8x25xf32>
    %12 = tpu.matmul %10, %11, %cst_9 {dimension_numbers = #tpu.dot_dimension_numbers<[1], [0], [0], [1], [0, 0, 1, 1], [], []>} : vector<8x25xf32>, vector<25x25xf32>, vector<8x25xf32> -> vector<8x25xf32>
    %c0_10 = arith.constant 0 : index
    %c0_11 = arith.constant 0 : index
    %13 = vector.load %arg5[%c0_10, %c0_11] : memref<1x25xf32, #tpu.memory_space<vmem>>, vector<1x25xf32>
    %14 = vector.broadcast %13 : vector<1x25xf32> to vector<8x25xf32>
    %15 = arith.addf %12, %14 : vector<8x25xf32>
    %cst_12 = arith.constant 0.000000e+00 : f32
    %16 = vector.broadcast %cst_12 : f32 to vector<8x25xf32>
    %17 = arith.cmpf ogt, %15, %16 : vector<8x25xf32>
    %cst_13 = arith.constant 0.00999999977 : f32
    %18 = vector.broadcast %cst_13 : f32 to vector<8x25xf32>
    %19 = arith.mulf %18, %15 : vector<8x25xf32>
    %20 = arith.select %17, %15, %19 : vector<8x25xi1>, vector<8x25xf32>
    %c0_14 = arith.constant 0 : index
    %c0_15 = arith.constant 0 : index
    %21 = vector.load %arg6[%c0_14, %c0_15] : memref<25x10xf32, #tpu.memory_space<vmem>>, vector<25x10xf32>
    %cst_16 = arith.constant dense<0.000000e+00> : vector<8x10xf32>
    %22 = tpu.matmul %20, %21, %cst_16 {dimension_numbers = #tpu.dot_dimension_numbers<[1], [0], [0], [1], [0, 0, 1, 1], [], []>} : vector<8x25xf32>, vector<25x10xf32>, vector<8x10xf32> -> vector<8x10xf32>
    %c0_17 = arith.constant 0 : index
    %c0_18 = arith.constant 0 : index
    %23 = vector.load %arg7[%c0_17, %c0_18] : memref<1x10xf32, #tpu.memory_space<vmem>>, vector<1x10xf32>
    %24 = vector.broadcast %23 : vector<1x10xf32> to vector<8x10xf32>
    %25 = arith.addf %22, %24 : vector<8x10xf32>
    %c0_19 = arith.constant 0 : index
    %c0_20 = arith.constant 0 : index
    %26 = vector.load %arg8[%c0_19, %c0_20] : memref<8x10xf32, #tpu.memory_space<vmem>>, vector<8x10xf32>
    tpu.vector_store %arg8[%c0_19, %c0_20], %25 {strides = array<i32>} : memref<8x10xf32, #tpu.memory_space<vmem>>, vector<8x10xf32>,
    return
  }
  func.func @transform_0(%arg0: i32) -> (i32, i32) {
    %c0_i32 = arith.constant 0 : i32
    %c0_i32_0 = arith.constant 0 : i32
    return %arg0, %c0_i32 : i32, i32
  }
  func.func @transform_1(%arg0: i32) -> (i32, i32) {
    %c0_i32 = arith.constant 0 : i32
    %c0_i32_0 = arith.constant 0 : i32
    %c0_i32_1 = arith.constant 0 : i32
    return %c0_i32, %c0_i32_0 : i32, i32
  }
  func.func @transform_2(%arg0: i32) -> (i32, i32) {
    %c0_i32 = arith.constant 0 : i32
    %c0_i32_0 = arith.constant 0 : i32
    %c0_i32_1 = arith.constant 0 : i32
    return %c0_i32, %c0_i32_0 : i32, i32
  }
  func.func @transform_3(%arg0: i32) -> (i32, i32) {
    %c0_i32 = arith.constant 0 : i32
    %c0_i32_0 = arith.constant 0 : i32
    %c0_i32_1 = arith.constant 0 : i32
    return %c0_i32, %c0_i32_0 : i32, i32
  }
  func.func @transform_4(%arg0: i32) -> (i32, i32) {
    %c0_i32 = arith.constant 0 : i32
    %c0_i32_0 = arith.constant 0 : i32
    %c0_i32_1 = arith.constant 0 : i32
    return %c0_i32, %c0_i32_0 : i32, i32
  }
  func.func @transform_5(%arg0: i32) -> (i32, i32) {
    %c0_i32 = arith.constant 0 : i32
    %c0_i32_0 = arith.constant 0 : i32
    %c0_i32_1 = arith.constant 0 : i32
    return %c0_i32, %c0_i32_0 : i32, i32
  }
  func.func @transform_6(%arg0: i32) -> (i32, i32) {
    %c0_i32 = arith.constant 0 : i32
    %c0_i32_0 = arith.constant 0 : i32
    %c0_i32_1 = arith.constant 0 : i32
    return %c0_i32, %c0_i32_0 : i32, i32
  }
  func.func @transform_7(%arg0: i32) -> (i32, i32) {
    %c0_i32 = arith.constant 0 : i32
    %c0_i32_0 = arith.constant 0 : i32
    return %arg0, %c0_i32 : i32, i32
  }
}

</mosaic_0001>

<llo_original>
// kernel: new_task_block_forward.1
$region0: #{new_task_block_forward.1}
  #allocation0 [shape = 'u32[]', space=smem, size = 0x4, offset = 0x4, fixed_abs, tag = 'smem constant byte address 0x4 - core index']
  #allocation1 [shape = 'u32[144,128]{1,0:T(1,128)}', space=vmem, size = 0x12000, scoped, tag = 'internal scratch']
  %s0 = inlined_call_operand.vmem [shape: f32[8,484], index: 0, kind: input, shape index: {}]
  %s1 = inlined_call_operand.vmem [shape: f32[484,25], index: 1, kind: input, shape index: {}]
  %s2 = inlined_call_operand.vmem [shape: f32[1,25], index: 2, kind: input, shape index: {}]
  %s3 = inlined_call_operand.vmem [shape: f32[25,25], index: 3, kind: input, shape index: {}]
  %s4 = inlined_call_operand.vmem [shape: f32[1,25], index: 4, kind: input, shape index: {}]
  %s5 = inlined_call_operand.vmem [shape: f32[25,10], index: 5, kind: input, shape index: {}]
  %s6 = inlined_call_operand.vmem [shape: f32[1,10], index: 6, kind: input, shape index: {}]
  %s7 = inlined_call_operand.vmem [shape: f32[8,10], index: 7, kind: output, shape index: {}]
  %s8 = sld [smem:[#allocation0]]
  $region38: #{new_task_block_forward.1} parent=0
    _
  %s10 = ssub.s32 1, %s8
  %s11 = scalar_select 0, %s10, %s8
  // Predicated region
  $region2: #{new_task_block_forward.1} parent=0 // pred_check
    _
  $region3: #{new_task_block_forward.1} parent=0 // pred_check_branch
    %13 = sbr.rel (0) target = $region5
  $region4: #{new_task_block_forward.1} parent=0 // pred_region
    _
  $region5: #{new_task_block_forward.1} parent=0 // pred_fallthru
    _
  // Predicated region
  $region6: #{new_task_block_forward.1} parent=0 // pred_check
    _
  $region7: #{new_task_block_forward.1} parent=0 // pred_check_branch
    %15 = sbr.rel (0) target = $region9
  $region8: #{new_task_block_forward.1} parent=0 // pred_region
    _
  $region9: #{new_task_block_forward.1} parent=0 // pred_fallthru
    _
  // Predicated region
  $region10: #{new_task_block_forward.1} parent=0 // pred_check
    _
  $region11: #{new_task_block_forward.1} parent=0 // pred_check_branch
    %17 = sbr.rel (0) target = $region13
  $region12: #{new_task_block_forward.1} parent=0 // pred_region
    _
  $region13: #{new_task_block_forward.1} parent=0 // pred_fallthru
    _
  // Predicated region
  $region14: #{new_task_block_forward.1} parent=0 // pred_check
    _
  $region15: #{new_task_block_forward.1} parent=0 // pred_check_branch
    %19 = sbr.rel (0) target = $region17
  $region16: #{new_task_block_forward.1} parent=0 // pred_region
    _
  $region17: #{new_task_block_forward.1} parent=0 // pred_fallthru
    _
  // Predicated region
  $region18: #{new_task_block_forward.1} parent=0 // pred_check
    _
  $region19: #{new_task_block_forward.1} parent=0 // pred_check_branch
    %21 = sbr.rel (0) target = $region21
  $region20: #{new_task_block_forward.1} parent=0 // pred_region
    _
  $region21: #{new_task_block_forward.1} parent=0 // pred_fallthru
    _
  // Predicated region
  $region22: #{new_task_block_forward.1} parent=0 // pred_check
    _
  $region23: #{new_task_block_forward.1} parent=0 // pred_check_branch
    %23 = sbr.rel (0) target = $region25
  $region24: #{new_task_block_forward.1} parent=0 // pred_region
    _
  $region25: #{new_task_block_forward.1} parent=0 // pred_fallthru
    _
  // Predicated region
  $region26: #{new_task_block_forward.1} parent=0 // pred_check
    _
  $region27: #{new_task_block_forward.1} parent=0 // pred_check_branch
    %25 = sbr.rel (0) target = $region29
  $region28: #{new_task_block_forward.1} parent=0 // pred_region
    _
  $region29: #{new_task_block_forward.1} parent=0 // pred_fallthru
    _
  %v26 = vld [vmem:[%s0] sm:$0xff]
  %v27 = vld [vmem:[%s0 + $0x8] sm:$0xff]
  %v28 = vld [vmem:[%s0 + $0x10] sm:$0xff]
  %v29 = vld [vmem:[%s0 + $0x18] sm:$0xff]
  %v30 = vld [vmem:[%s1] sm:$0xff]
  %v31 = vld [vmem:[%s1 + $0x8] sm:$0xff]
  %v32 = vld [vmem:[%s1 + $0x10] sm:$0xff]
  %v33 = vld [vmem:[%s1 + $0x18] sm:$0xff]
  %v34 = vld [vmem:[%s1 + $0x20] sm:$0xff]
  %v35 = vld [vmem:[%s1 + $0x28] sm:$0xff]
  %v36 = vld [vmem:[%s1 + $0x30] sm:$0xff]
  %v37 = vld [vmem:[%s1 + $0x38] sm:$0xff]
  %v38 = vld [vmem:[%s1 + $0x40] sm:$0xff]
  %v39 = vld [vmem:[%s1 + $0x48] sm:$0xff]
  %v40 = vld [vmem:[%s1 + $0x50] sm:$0xff]
  %v41 = vld [vmem:[%s1 + $0x58] sm:$0xff]
  %v42 = vld [vmem:[%s1 + $0x60] sm:$0xff]
  %v43 = vld [vmem:[%s1 + $0x68] sm:$0xff]
  %v44 = vld [vmem:[%s1 + $0x70] sm:$0xff]
  %v45 = vld [vmem:[%s1 + $0x78] sm:$0xff]
  %v46 = vld [vmem:[%s1 + $0x80] sm:$0xff]
  %v47 = vld [vmem:[%s1 + $0x88] sm:$0xff]
  %v48 = vld [vmem:[%s1 + $0x90] sm:$0xff]
  %v49 = vld [vmem:[%s1 + $0x98] sm:$0xff]
  %v50 = vld [vmem:[%s1 + $0xa0] sm:$0xff]
  %v51 = vld [vmem:[%s1 + $0xa8] sm:$0xff]
  %v52 = vld [vmem:[%s1 + $0xb0] sm:$0xff]
  %v53 = vld [vmem:[%s1 + $0xb8] sm:$0xff]
  %v54 = vld [vmem:[%s1 + $0xc0] sm:$0xff]
  %v55 = vld [vmem:[%s1 + $0xc8] sm:$0xff]
  %v56 = vld [vmem:[%s1 + $0xd0] sm:$0xff]
  %v57 = vld [vmem:[%s1 + $0xd8] sm:$0xff]
  %v58 = vld [vmem:[%s1 + $0xe0] sm:$0xff]
  %v59 = vld [vmem:[%s1 + $0xe8] sm:$0xff]
  %v60 = vld [vmem:[%s1 + $0xf0] sm:$0xff]
  %v61 = vld [vmem:[%s1 + $0xf8] sm:$0xff]
  %v62 = vld [vmem:[%s1 + $0x100] sm:$0xff]
  %v63 = vld [vmem:[%s1 + $0x108] sm:$0xff]
  %v64 = vld [vmem:[%s1 + $0x110] sm:$0xff]
  %v65 = vld [vmem:[%s1 + $0x118] sm:$0xff]
  %v66 = vld [vmem:[%s1 + $0x120] sm:$0xff]
  %v67 = vld [vmem:[%s1 + $0x128] sm:$0xff]
  %v68 = vld [vmem:[%s1 + $0x130] sm:$0xff]
  %v69 = vld [vmem:[%s1 + $0x138] sm:$0xff]
  %v70 = vld [vmem:[%s1 + $0x140] sm:$0xff]
  %v71 = vld [vmem:[%s1 + $0x148] sm:$0xff]
  %v72 = vld [vmem:[%s1 + $0x150] sm:$0xff]
  %v73 = vld [vmem:[%s1 + $0x158] sm:$0xff]
  %v74 = vld [vmem:[%s1 + $0x160] sm:$0xff]
  %v75 = vld [vmem:[%s1 + $0x168] sm:$0xff]
  %v76 = vld [vmem:[%s1 + $0x170] sm:$0xff]
  %v77 = vld [vmem:[%s1 + $0x178] sm:$0xff]
  %v78 = vld [vmem:[%s1 + $0x180] sm:$0xff]
  %v79 = vld [vmem:[%s1 + $0x188] sm:$0xff]
  %v80 = vld [vmem:[%s1 + $0x190] sm:$0xff]
  %v81 = vld [vmem:[%s1 + $0x198] sm:$0xff]
  %v82 = vld [vmem:[%s1 + $0x1a0] sm:$0xff]
  %v83 = vld [vmem:[%s1 + $0x1a8] sm:$0xff]
  %v84 = vld [vmem:[%s1 + $0x1b0] sm:$0xff]
  %v85 = vld [vmem:[%s1 + $0x1b8] sm:$0xff]
  %v86 = vld [vmem:[%s1 + $0x1c0] sm:$0xff]
  %v87 = vld [vmem:[%s1 + $0x1c8] sm:$0xff]
  %v88 = vld [vmem:[%s1 + $0x1d0] sm:$0xff]
  %v89 = vld [vmem:[%s1 + $0x1d8] sm:$0xff]
  %v90 = vld [vmem:[%s1 + $0x1e0] sm:$0xf]
  %v91 = vld [vmem:[%s2] sm:$0x1]
  %v93 = vlaneseq
  %v94 = vshrl.u32 %v93, 7
  %v95 = vsub.s32 0, %v94
  %v96 = vrot.slane %v91, %v95
  %vm98 = vcmask 818176
  %v100 = vsel %vm98, %v29, 0
  %vm102 = vcmask 1043456
  %v104 = vsel %vm102, %v90, 0
  %106 = vmatprep.subr.mxu0 0.0
  %107 = vmatpush1.msra.mxu0 %v45
  %108 = vmatprep.subr.mxu0 0.0
  %109 = vmatpush1.msra.mxu0 %v44
  %110 = vmatprep.subr.mxu0 0.0
  %111 = vmatpush1.msra.mxu0 %v43
  %112 = vmatprep.subr.mxu0 0.0
  %113 = vmatpush1.msra.mxu0 %v42
  %114 = vmatprep.subr.mxu0 0.0
  %115 = vmatpush1.msra.mxu0 %v41
  %116 = vmatprep.subr.mxu0 0.0
  %117 = vmatpush1.msra.mxu0 %v40
  %118 = vmatprep.subr.mxu0 0.0
  %119 = vmatpush1.msra.mxu0 %v39
  %120 = vmatprep.subr.mxu0 0.0
  %121 = vmatpush1.msra.mxu0 %v38
  %122 = vmatprep.subr.mxu0 0.0
  %123 = vmatpush1.msra.mxu0 %v37
  %124 = vmatprep.subr.mxu0 0.0
  %125 = vmatpush1.msra.mxu0 %v36
  %126 = vmatprep.subr.mxu0 0.0
  %127 = vmatpush1.msra.mxu0 %v35
  %128 = vmatprep.subr.mxu0 0.0
  %129 = vmatpush1.msra.mxu0 %v34
  %130 = vmatprep.subr.mxu0 0.0
  %131 = vmatpush1.msra.mxu0 %v33
  %132 = vmatprep.subr.mxu0 0.0
  %133 = vmatpush1.msra.mxu0 %v32
  %134 = vmatprep.subr.mxu0 0.0
  %135 = vmatpush1.msra.mxu0 %v31
  %136 = vmatprep.subr.mxu0 0.0
  %137 = vmatpush1.msra.mxu0 %v30
  %138 = vmatprep.subr.mxu0 0.0
  %139 = vmatpush2.msra.mxu0 %v61
  %140 = vmatprep.subr.mxu0 0.0
  %141 = vmatpush2.msra.mxu0 %v60
  %142 = vmatprep.subr.mxu0 0.0
  %143 = vmatpush2.msra.mxu0 %v59
  %144 = vmatprep.subr.mxu0 0.0
  %145 = vmatpush2.msra.mxu0 %v58
  %146 = vmatprep.subr.mxu0 0.0
  %147 = vmatpush2.msra.mxu0 %v57
  %148 = vmatprep.subr.mxu0 0.0
  %149 = vmatpush2.msra.mxu0 %v56
  %150 = vmatprep.subr.mxu0 0.0
  %151 = vmatpush2.msra.mxu0 %v55
  %152 = vmatprep.subr.mxu0 0.0
  %153 = vmatpush2.msra.mxu0 %v54
  %154 = vmatprep.subr.mxu0 0.0
  %155 = vmatpush2.msra.mxu0 %v53
  %156 = vmatprep.subr.mxu0 0.0
  %157 = vmatpush2.msra.mxu0 %v52
  %158 = vmatprep.subr.mxu0 0.0
  %159 = vmatpush2.msra.mxu0 %v51
  %160 = vmatprep.subr.mxu0 0.0
  %161 = vmatpush2.msra.mxu0 %v50
  %162 = vmatprep.subr.mxu0 0.0
  %163 = vmatpush2.msra.mxu0 %v49
  %164 = vmatprep.subr.mxu0 0.0
  %165 = vmatpush2.msra.mxu0 %v48
  %166 = vmatprep.subr.mxu0 0.0
  %167 = vmatpush2.msra.mxu0 %v47
  %168 = vmatprep.subr.mxu0 0.0
  %169 = vmatpush2.msra.mxu0 %v46
  %170 = vmatprep.mubr.f32.mxu0 %v27
  %171 = vmatmul.mubr.f32.gmra.mxu0 %v26
  %v172 = vpop.f32.mrf.mxu0
  %v173 = vadd.f32 %v96, %v172
  %v174 = vpop.f32.mrf.mxu0
  %175 = vdwg.mxu0
  %176 = vmatprep.subr.mxu0 0.0
  %177 = vmatpush1.msra.mxu0 %v77
  %178 = vmatprep.subr.mxu0 0.0
  %179 = vmatpush1.msra.mxu0 %v76
  %180 = vmatprep.subr.mxu0 0.0
  %181 = vmatpush1.msra.mxu0 %v75
  %182 = vmatprep.subr.mxu0 0.0
  %183 = vmatpush1.msra.mxu0 %v74
  %184 = vmatprep.subr.mxu0 0.0
  %185 = vmatpush1.msra.mxu0 %v73
  %186 = vmatprep.subr.mxu0 0.0
  %187 = vmatpush1.msra.mxu0 %v72
  %188 = vmatprep.subr.mxu0 0.0
  %189 = vmatpush1.msra.mxu0 %v71
  %190 = vmatprep.subr.mxu0 0.0
  %191 = vmatpush1.msra.mxu0 %v70
  %192 = vmatprep.subr.mxu0 0.0
  %193 = vmatpush1.msra.mxu0 %v69
  %194 = vmatprep.subr.mxu0 0.0
  %195 = vmatpush1.msra.mxu0 %v68
  %196 = vmatprep.subr.mxu0 0.0
  %197 = vmatpush1.msra.mxu0 %v67
  %198 = vmatprep.subr.mxu0 0.0
  %199 = vmatpush1.msra.mxu0 %v66
  %200 = vmatprep.subr.mxu0 0.0
  %201 = vmatpush1.msra.mxu0 %v65
  %202 = vmatprep.subr.mxu0 0.0
  %203 = vmatpush1.msra.mxu0 %v64
  %204 = vmatprep.subr.mxu0 0.0
  %205 = vmatpush1.msra.mxu0 %v63
  %206 = vmatprep.subr.mxu0 0.0
  %207 = vmatpush1.msra.mxu0 %v62
  %208 = vmatprep.subr.mxu0 0.0
  %209 = vmatpush2.msra.mxu0 0.0
  %210 = vmatprep.subr.mxu0 0.0
  %211 = vmatpush2.msra.mxu0 0.0
  %212 = vmatprep.subr.mxu0 0.0
  %213 = vmatpush2.msra.mxu0 0.0
  %214 = vmatprep.subr.mxu0 0.0
  %215 = vmatpush2.msra.mxu0 %v104
  %216 = vmatprep.subr.mxu0 0.0
  %217 = vmatpush2.msra.mxu0 %v89
  %218 = vmatprep.subr.mxu0 0.0
  %219 = vmatpush2.msra.mxu0 %v88
  %220 = vmatprep.subr.mxu0 0.0
  %221 = vmatpush2.msra.mxu0 %v87
  %222 = vmatprep.subr.mxu0 0.0
  %223 = vmatpush2.msra.mxu0 %v86
  %224 = vmatprep.subr.mxu0 0.0
  %225 = vmatpush2.msra.mxu0 %v85
  %226 = vmatprep.subr.mxu0 0.0
  %227 = vmatpush2.msra.mxu0 %v84
  %228 = vmatprep.subr.mxu0 0.0
  %229 = vmatpush2.msra.mxu0 %v83
  %230 = vmatprep.subr.mxu0 0.0
  %231 = vmatpush2.msra.mxu0 %v82
  %232 = vmatprep.subr.mxu0 0.0
  %233 = vmatpush2.msra.mxu0 %v81
  %234 = vmatprep.subr.mxu0 0.0
  %235 = vmatpush2.msra.mxu0 %v80
  %236 = vmatprep.subr.mxu0 0.0
  %237 = vmatpush2.msra.mxu0 %v79
  %238 = vmatprep.subr.mxu0 0.0
  %239 = vmatpush2.msra.mxu0 %v78
  %240 = vmatprep.mubr.f32.mxu0 %v100
  %241 = vmatmul.mubr.f32.gmra.mxu0 %v28
  %v242 = vpop.f32.mrf.mxu0
  %v243 = vadd.f32 %v173, %v242
  %v244 = vpop.f32.mrf.mxu0
  %245 = vdwg.mxu0
  %vm246 = vcmp.gt.f32.partialorder %v243, 0.0
  %v247 = vmul.f32 %v243, 0.01
  %v248 = vsel %vm246, %v243, %v247
  %v249 = vld [vmem:[%s3] sm:$0xff]
  %v250 = vld [vmem:[%s3 + $0x8] sm:$0xff]
  %v251 = vld [vmem:[%s3 + $0x10] sm:$0xff]
  %v252 = vld [vmem:[%s3 + $0x18] sm:$0x1]
  %v253 = vld [vmem:[%s4] sm:$0x1]
  %v255 = vlaneseq
  %v256 = vshrl.u32 %v255, 7
  %v257 = vsub.s32 0, %v256
  %v258 = vrot.slane %v253, %v257
  %vm260 = vcmask 203776
  %v262 = vsel %vm260, %v248, 0
  %vm264 = vcmask 1040384
  %v266 = vsel %vm264, %v252, 0
  %268 = vmatprep.subr.mxu0 0.0
  %269 = vmatpush1.msra.mxu0 0.0
  %270 = vmatprep.subr.mxu0 0.0
  %271 = vmatpush1.msra.mxu0 0.0
  %272 = vmatprep.subr.mxu0 0.0
  %273 = vmatpush1.msra.mxu0 0.0
  %274 = vmatprep.subr.mxu0 0.0
  %275 = vmatpush1.msra.mxu0 0.0
  %276 = vmatprep.subr.mxu0 0.0
  %277 = vmatpush1.msra.mxu0 0.0
  %278 = vmatprep.subr.mxu0 0.0
  %279 = vmatpush1.msra.mxu0 0.0
  %280 = vmatprep.subr.mxu0 0.0
  %281 = vmatpush1.msra.mxu0 0.0
  %282 = vmatprep.subr.mxu0 0.0
  %283 = vmatpush1.msra.mxu0 0.0
  %284 = vmatprep.subr.mxu0 0.0
  %285 = vmatpush1.msra.mxu0 0.0
  %286 = vmatprep.subr.mxu0 0.0
  %287 = vmatpush1.msra.mxu0 0.0
  %288 = vmatprep.subr.mxu0 0.0
  %289 = vmatpush1.msra.mxu0 0.0
  %290 = vmatprep.subr.mxu0 0.0
  %291 = vmatpush1.msra.mxu0 0.0
  %292 = vmatprep.subr.mxu0 0.0
  %293 = vmatpush1.msra.mxu0 %v266
  %294 = vmatprep.subr.mxu0 0.0
  %295 = vmatpush1.msra.mxu0 %v251
  %296 = vmatprep.subr.mxu0 0.0
  %297 = vmatpush1.msra.mxu0 %v250
  %298 = vmatprep.subr.mxu0 0.0
  %299 = vmatpush1.msra.mxu0 %v249
  %300 = vmatprep.subr.mxu0 0.0
  %301 = vmatpush2.msra.mxu0 0.0
  %302 = vmatprep.subr.mxu0 0.0
  %303 = vmatpush2.msra.mxu0 0.0
  %304 = vmatprep.subr.mxu0 0.0
  %305 = vmatpush2.msra.mxu0 0.0
  %306 = vmatprep.subr.mxu0 0.0
  %307 = vmatpush2.msra.mxu0 0.0
  %308 = vmatprep.subr.mxu0 0.0
  %309 = vmatpush2.msra.mxu0 0.0
  %310 = vmatprep.subr.mxu0 0.0
  %311 = vmatpush2.msra.mxu0 0.0
  %312 = vmatprep.subr.mxu0 0.0
  %313 = vmatpush2.msra.mxu0 0.0
  %314 = vmatprep.subr.mxu0 0.0
  %315 = vmatpush2.msra.mxu0 0.0
  %316 = vmatprep.subr.mxu0 0.0
  %317 = vmatpush2.msra.mxu0 0.0
  %318 = vmatprep.subr.mxu0 0.0
  %319 = vmatpush2.msra.mxu0 0.0
  %320 = vmatprep.subr.mxu0 0.0
  %321 = vmatpush2.msra.mxu0 0.0
  %322 = vmatprep.subr.mxu0 0.0
  %323 = vmatpush2.msra.mxu0 0.0
  %324 = vmatprep.subr.mxu0 0.0
  %325 = vmatpush2.msra.mxu0 0.0
  %326 = vmatprep.subr.mxu0 0.0
  %327 = vmatpush2.msra.mxu0 0.0
  %328 = vmatprep.subr.mxu0 0.0
  %329 = vmatpush2.msra.mxu0 0.0
  %330 = vmatprep.subr.mxu0 0.0
  %331 = vmatpush2.msra.mxu0 0.0
  %332 = vmatprep.mubr.f32.mxu0 0.0
  %333 = vmatmul.mubr.f32.gmra.mxu0 %v262
  %v334 = vpop.f32.mrf.mxu0
  %v335 = vadd.f32 %v258, %v334
  %v336 = vpop.f32.mrf.mxu0
  %337 = vdwg.mxu0
  %vm338 = vcmp.gt.f32.partialorder %v335, 0.0
  %v339 = vmul.f32 %v335, 0.01
  %v340 = vsel %vm338, %v335, %v339
  %v341 = vld [vmem:[%s5] sm:$0xff]
  %v342 = vld [vmem:[%s5 + $0x8] sm:$0xff]
  %v343 = vld [vmem:[%s5 + $0x10] sm:$0xff]
  %v344 = vld [vmem:[%s5 + $0x18] sm:$0x1]
  %v345 = vld [vmem:[%s6] sm:$0x1]
  %v347 = vlaneseq
  %v348 = vshrl.u32 %v347, 7
  %v349 = vsub.s32 0, %v348
  %v350 = vrot.slane %v345, %v349
  %v353 = vsel %vm260, %v340, 0
  %v356 = vsel %vm264, %v344, 0
  %358 = vmatprep.subr.mxu0 0.0
  %359 = vmatpush1.msra.mxu0 0.0
  %360 = vmatprep.subr.mxu0 0.0
  %361 = vmatpush1.msra.mxu0 0.0
  %362 = vmatprep.subr.mxu0 0.0
  %363 = vmatpush1.msra.mxu0 0.0
  %364 = vmatprep.subr.mxu0 0.0
  %365 = vmatpush1.msra.mxu0 0.0
  %366 = vmatprep.subr.mxu0 0.0
  %367 = vmatpush1.msra.mxu0 0.0
  %368 = vmatprep.subr.mxu0 0.0
  %369 = vmatpush1.msra.mxu0 0.0
  %370 = vmatprep.subr.mxu0 0.0
  %371 = vmatpush1.msra.mxu0 0.0
  %372 = vmatprep.subr.mxu0 0.0
  %373 = vmatpush1.msra.mxu0 0.0
  %374 = vmatprep.subr.mxu0 0.0
  %375 = vmatpush1.msra.mxu0 0.0
  %376 = vmatprep.subr.mxu0 0.0
  %377 = vmatpush1.msra.mxu0 0.0
  %378 = vmatprep.subr.mxu0 0.0
  %379 = vmatpush1.msra.mxu0 0.0
  %380 = vmatprep.subr.mxu0 0.0
  %381 = vmatpush1.msra.mxu0 0.0
  %382 = vmatprep.subr.mxu0 0.0
  %383 = vmatpush1.msra.mxu0 %v356
  %384 = vmatprep.subr.mxu0 0.0
  %385 = vmatpush1.msra.mxu0 %v343
  %386 = vmatprep.subr.mxu0 0.0
  %387 = vmatpush1.msra.mxu0 %v342
  %388 = vmatprep.subr.mxu0 0.0
  %389 = vmatpush1.msra.mxu0 %v341
  %390 = vmatprep.subr.mxu0 0.0
  %391 = vmatpush2.msra.mxu0 0.0
  %392 = vmatprep.subr.mxu0 0.0
  %393 = vmatpush2.msra.mxu0 0.0
  %394 = vmatprep.subr.mxu0 0.0
  %395 = vmatpush2.msra.mxu0 0.0
  %396 = vmatprep.subr.mxu0 0.0
  %397 = vmatpush2.msra.mxu0 0.0
  %398 = vmatprep.subr.mxu0 0.0
  %399 = vmatpush2.msra.mxu0 0.0
  %400 = vmatprep.subr.mxu0 0.0
  %401 = vmatpush2.msra.mxu0 0.0
  %402 = vmatprep.subr.mxu0 0.0
  %403 = vmatpush2.msra.mxu0 0.0
  %404 = vmatprep.subr.mxu0 0.0
  %405 = vmatpush2.msra.mxu0 0.0
  %406 = vmatprep.subr.mxu0 0.0
  %407 = vmatpush2.msra.mxu0 0.0
  %408 = vmatprep.subr.mxu0 0.0
  %409 = vmatpush2.msra.mxu0 0.0
  %410 = vmatprep.subr.mxu0 0.0
  %411 = vmatpush2.msra.mxu0 0.0
  %412 = vmatprep.subr.mxu0 0.0
  %413 = vmatpush2.msra.mxu0 0.0
  %414 = vmatprep.subr.mxu0 0.0
  %415 = vmatpush2.msra.mxu0 0.0
  %416 = vmatprep.subr.mxu0 0.0
  %417 = vmatpush2.msra.mxu0 0.0
  %418 = vmatprep.subr.mxu0 0.0
  %419 = vmatpush2.msra.mxu0 0.0
  %420 = vmatprep.subr.mxu0 0.0
  %421 = vmatpush2.msra.mxu0 0.0
  %422 = vmatprep.mubr.f32.mxu0 0.0
  %423 = vmatmul.mubr.f32.gmra.mxu0 %v353
  %v424 = vpop.f32.mrf.mxu0
  %v425 = vadd.f32 %v350, %v424
  %v426 = vpop.f32.mrf.mxu0
  %427 = vdwg.mxu0
  %vm428 = vcmask 80896
  %429 = vst.msk [vmem:[%s7] sm:$0xff] %vm428, %v425
  // Predicated region
  $region30: #{new_task_block_forward.1} parent=0 // pred_check
    _
  $region31: #{new_task_block_forward.1} parent=0 // pred_check_branch
    %431 = sbr.rel (0) target = $region33
  $region32: #{new_task_block_forward.1} parent=0 // pred_region
    _
  $region33: #{new_task_block_forward.1} parent=0 // pred_fallthru
    _
  // Predicated region
  $region34: #{new_task_block_forward.1} parent=0 // pred_check
    _
  $region35: #{new_task_block_forward.1} parent=0 // pred_check_branch
    %433 = sbr.rel (0) target = $region37
  $region36: #{new_task_block_forward.1} parent=0 // pred_region
    _
  $region37: #{new_task_block_forward.1} parent=0 // pred_fallthru
    _

</llo_original>
